<compile_context>
chip_gen: v5e
topology: v5e:2x2
jax: 0.10.0
libtpu: 0.0.40
codegen_flags: <defaults>
</compile_context>

<pallas_src>
import functools

import jax
import jax.numpy as jnp
from jax import lax
from jax.experimental import pallas as pl
from jax.experimental.pallas import tpu as pltpu


def _round_up(x: int, m: int) -> int:
    return ((x + m - 1) // m) * m


def _lane_group_sum(xb_f32, tile_hw):
    """Sum 128-lane groups of a (rows, tile_hw) f32 block -> (rows, 128).

    Static 128-aligned lane slices are pure vreg reindexing; the adds stay on the VPU.
    The single cross-lane (XLU) reduce is deferred to the finalize step.
    """
    psum = xb_f32[:, 0:128]
    for g in range(1, tile_hw // 128):
        psum = psum + xb_f32[:, g * 128:(g + 1) * 128]
    return psum


def _gap_kernel(x_ref, o_ref, acc_ref, *, tile_hw, tail_valid, inv_hw):
    # Grid = (row_tiles, hw_tiles); hw (reduction) axis is last / "arbitrary".
    k = pl.program_id(1)
    nk = pl.num_programs(1)

    @pl.when(k == 0)
    def _():
        acc_ref[...] = jnp.zeros_like(acc_ref)

    if tail_valid == tile_hw:
        # hw is covered exactly by the lane tiles: mask-free hot loop everywhere.
        acc_ref[...] += _lane_group_sum(x_ref[...].astype(jnp.float32), tile_hw)
    else:
        # Only the last hw block contains out-of-bounds (garbage) lanes; mask them there
        # and keep every other block on the mask-free path.
        @pl.when(k < nk - 1)
        def _():
            acc_ref[...] += _lane_group_sum(x_ref[...].astype(jnp.float32), tile_hw)

        @pl.when(k == nk - 1)
        def _():
            xb = x_ref[...].astype(jnp.float32)
            lane = lax.broadcasted_iota(jnp.int32, xb.shape, 1)
            xb = jnp.where(lane < tail_valid, xb, 0.0)
            acc_ref[...] += _lane_group_sum(xb, tile_hw)

    @pl.when(k == nk - 1)
    def _():
        s = jnp.sum(acc_ref[...], axis=-1, keepdims=True)  # one cross-lane reduce
        o_ref[...] = (s * inv_hw).astype(o_ref.dtype)


def _gap_small_kernel(x_ref, o_ref, *, inv_hw):
    # Full-hw block (block last dim == array dim, so no 128-alignment / masking needed).
    xb = x_ref[...].astype(jnp.float32)
    s = jnp.sum(xb, axis=-1, keepdims=True)
    o_ref[...] = (s * inv_hw).astype(o_ref.dtype)


def global_average_pooling(x, *, target_block_bytes=8 * 1024 * 1024):
    """Equivalent of the PyTorch module's forward: NCHW -> (N, C) spatial mean."""
    assert x.ndim == 4, x.shape
    n, c, h, w = x.shape
    r, hw = n * c, h * w
    itemsize = jnp.dtype(x.dtype).itemsize
    sub = {1: 32, 2: 16, 4: 8}.get(itemsize, 8)     # sublane packing per dtype
    inv_hw = 1.0 / float(hw)

    xf = x.reshape(r, hw)                            # contiguous collapse: no data movement

    # ---- lane (H*W) chunking -------------------------------------------------
    small = hw <= 512
    if small:
        tile_hw, num_k = hw, 1                       # full-dim block, single step
    else:
        hw128 = _round_up(hw, 128)
        if hw128 <= 2048:
            tile_hw = hw128
        else:
            tile_hw = 0
            for t in range(16, 8, -1):               # exact cover with 1152..2048-lane chunks
                if hw128 % (t * 128) == 0:
                    tile_hw = t * 128
                    break
            if tile_hw == 0:                         # no nice divisor: balance + in-kernel tail mask
                nk0 = pl.cdiv(hw128, 2048)
                tile_hw = _round_up(pl.cdiv(hw128, nk0), 128)
        num_k = pl.cdiv(hw, tile_hw)
    tail_valid = hw - (num_k - 1) * tile_hw          # valid lanes in the last hw block

    # ---- row tiling: balanced, ~target_block_bytes, >=2 tiles for v7x megacore ----
    r_sub = _round_up(r, sub)
    budget_rows = max(sub, (target_block_bytes // (max(tile_hw, 128) * itemsize)) // sub * sub)
    tile_rows = min(budget_rows, 4096, r_sub)
    if r_sub >= 2 * sub:                             # keep >=2 blocks on the "parallel" axis
        tile_rows = min(tile_rows, _round_up(pl.cdiv(r_sub, 2), sub))
    num_i = pl.cdiv(r_sub, tile_rows)
    tile_rows = _round_up(pl.cdiv(r_sub, num_i), sub)  # balance the row tiles
    num_i = pl.cdiv(r_sub, tile_rows)
    rows_out = num_i * tile_rows                     # output fully covered by blocks

    cost = pl.CostEstimate(
        flops=r * hw,
        transcendentals=0,
        bytes_accessed=r * hw * itemsize + rows_out * itemsize,
    )
    cparams_kw = dict(vmem_limit_bytes=40 * 1024 * 1024)

    if small:
        out = pl.pallas_call(
            functools.partial(_gap_small_kernel, inv_hw=inv_hw),
            out_shape=jax.ShapeDtypeStruct((rows_out, 1), x.dtype),
            grid_spec=pltpu.PrefetchScalarGridSpec(
                num_scalar_prefetch=0,
                grid=(num_i,),
                in_specs=[pl.BlockSpec((tile_rows, hw), lambda i: (i, 0))],
                out_specs=pl.BlockSpec((tile_rows, 1), lambda i: (i, 0)),
            ),
            compiler_params=pltpu.CompilerParams(
                dimension_semantics=("parallel",), **cparams_kw),
            cost_estimate=cost,
        )(xf)
    else:
        out = pl.pallas_call(
            functools.partial(_gap_kernel, tile_hw=tile_hw,
                              tail_valid=tail_valid, inv_hw=inv_hw),
            out_shape=jax.ShapeDtypeStruct((rows_out, 1), x.dtype),
            grid_spec=pltpu.PrefetchScalarGridSpec(
                num_scalar_prefetch=0,
                grid=(num_i, num_k),
                in_specs=[pl.BlockSpec((tile_rows, tile_hw), lambda i, k: (i, k))],
                out_specs=pl.BlockSpec((tile_rows, 1), lambda i, k: (i, 0)),
                scratch_shapes=[pltpu.VMEM((tile_rows, 128), jnp.float32)],
            ),
            compiler_params=pltpu.CompilerParams(
                dimension_semantics=("parallel", "arbitrary"), **cparams_kw),
            cost_estimate=cost,
        )(xf)

    return out[:r, 0].reshape(n, c)


if __name__ == "__main__":
    key = jax.random.PRNGKey(0)

    # Small NCHW input consistent with the module: batch=2, channels=4, spatial=16x16.
    x = jax.random.normal(key, (2, 4, 16, 16), dtype=jnp.float32)
    y = jax.block_until_ready(global_average_pooling(x))
    y_ref = jnp.mean(x, axis=(2, 3))
    assert y.shape == (2, 4), y.shape
    assert jnp.allclose(y, y_ref, atol=1e-5, rtol=1e-5), (y, y_ref)

    # Ragged spatial size on the small-H*W fast path (full-dim block, no padding/masking).
    x2 = jax.random.normal(jax.random.PRNGKey(1), (2, 4, 7, 7), dtype=jnp.float32)
    y2 = jax.block_until_ready(global_average_pooling(x2))
    assert jnp.allclose(y2, jnp.mean(x2, axis=(2, 3)), atol=1e-5, rtol=1e-5)

    # Ragged row count (N*C not a multiple of 8) + bf16 input (f32 accumulation).
    x3 = jax.random.normal(jax.random.PRNGKey(2), (1, 3, 5, 5), dtype=jnp.bfloat16)
    y3 = jax.block_until_ready(global_average_pooling(x3))
    assert jnp.allclose(
        y3.astype(jnp.float32),
        jnp.mean(x3.astype(jnp.float32), axis=(2, 3)),
        atol=1e-2, rtol=1e-2,
    )

    # General path, single hw chunk with a non-128-aligned tail (in-kernel lane mask).
    x4 = jax.random.normal(jax.random.PRNGKey(3), (2, 4, 24, 24), dtype=jnp.float32)
    y4 = jax.block_until_ready(global_average_pooling(x4))
    assert jnp.allclose(y4, jnp.mean(x4, axis=(2, 3)), atol=1e-5, rtol=1e-5)

    # General path, multiple hw chunks (exact 128-aligned cover, no masking).
    x5 = jax.random.normal(jax.random.PRNGKey(4), (1, 2, 48, 48), dtype=jnp.float32)
    y5 = jax.block_until_ready(global_average_pooling(x5))
    assert jnp.allclose(y5, jnp.mean(x5, axis=(2, 3)), atol=1e-5, rtol=1e-5)

    # General path, multiple hw chunks with a masked tail + multiple row tiles with
    # an out-of-bounds row tail (sliced off in the wrapper).
    x6 = jax.random.normal(jax.random.PRNGKey(5), (3, 7, 47, 47), dtype=jnp.float32)
    y6 = jax.block_until_ready(global_average_pooling(x6))
    assert jnp.allclose(y6, jnp.mean(x6, axis=(2, 3)), atol=1e-5, rtol=1e-5)

    print("KERNEL_OK")
</pallas_src>

<mosaic_0001>
module attributes {stable_mosaic.version = 11 : i64} {
  func.func @_gap_small_kernel(%arg0: i32, %arg1: memref<8x256xf32, #tpu.memory_space<vmem>>, %arg2: memref<8x1xf32, #tpu.memory_space<vmem>>) attributes {dimension_semantics = [#tpu.dimension_semantics<parallel>], iteration_bounds = array<i64: 1>, scalar_prefetch = 0 : i64, scratch_operands = 0 : i64, tpu.core_type = #tpu.core_type<tc>, window_params = [{transform_indices = @transform_0, window_bounds = array<i64: 8, 256>}, {transform_indices = @transform_1, window_bounds = array<i64: 8, 1>}]} {
    %c0 = arith.constant 0 : index
    %c0_0 = arith.constant 0 : index
    %0 = vector.load %arg1[%c0, %c0_0] : memref<8x256xf32, #tpu.memory_space<vmem>>, vector<8x256xf32>
    %cst = arith.constant dense<0.000000e+00> : vector<8xf32>
    %1 = vector.multi_reduction <add>, %0, %cst [1] : vector<8x256xf32> to vector<8xf32>
    %2 = vector.shape_cast %1 : vector<8xf32> to vector<8x1xf32>
    %cst_1 = arith.constant 3.906250e-03 : f32
    %3 = vector.broadcast %cst_1 : f32 to vector<8x1xf32>
    %4 = arith.mulf %2, %3 : vector<8x1xf32>
    %c0_2 = arith.constant 0 : index
    %c0_3 = arith.constant 0 : index
    %5 = vector.load %arg2[%c0_2, %c0_3] : memref<8x1xf32, #tpu.memory_space<vmem>>, vector<8x1xf32>
    tpu.vector_store %arg2[%c0_2, %c0_3], %4 {strides = array<i32>} : memref<8x1xf32, #tpu.memory_space<vmem>>, vector<8x1xf32>,
    return
  }
  func.func @transform_0(%arg0: i32) -> (i32, i32) {
    %c0_i32 = arith.constant 0 : i32
    %c0_i32_0 = arith.constant 0 : i32
    return %arg0, %c0_i32 : i32, i32
  }
  func.func @transform_1(%arg0: i32) -> (i32, i32) {
    %c0_i32 = arith.constant 0 : i32
    %c0_i32_0 = arith.constant 0 : i32
    return %arg0, %c0_i32 : i32, i32
  }
}

</mosaic_0001>

<llo_original>
// kernel: tpu_custom_call.1
$region0: #{tpu_custom_call.1}
  #allocation0 [shape = 'u32[]', space=smem, size = 0x4, offset = 0x4, fixed_abs, tag = 'smem constant byte address 0x4 - core index']
  #allocation1 [shape = 'u32[72,128]{1,0:T(1,128)}', space=vmem, size = 0x9000, scoped, tag = 'internal scratch']
  %s0 = inlined_call_operand.hbm [shape: f32[8,256], index: 0, kind: input, shape index: {}]
  %s1 = inlined_call_operand.vmem [shape: f32[8,1], index: 1, kind: output, shape index: {}]
  %s2 = sld [smem:[#allocation0]]
  $region18: #{tpu_custom_call.1} parent=0
    _
  %s4 = ssub.s32 1, %s2
  %s5 = scalar_select 0, %s4, %s2
  $region1: #{tpu_custom_call.1} parent=0
    #allocation2 [shape = 'u8[8192]{0}', space=vmem, size = 0x2000, scoped, tag = 'input window, operand 0, single buffered']
    #allocation3 [shape = 's32[1]{0}', space=sflag, size = 0x4, scoped, tag = 'scoped memory for tpu_custom_call.1']
    %6 = vsyncpa [#allocation3], 0
    // Predicated region
    $region2: #{tpu_custom_call.1} parent=1 // pred_check
      _
    $region3: #{tpu_custom_call.1} parent=1 // pred_check_branch
      %8 = sbr.rel (0) target = $region5
    $region4: #{tpu_custom_call.1} parent=1 // pred_region
      %10 = vsyncadd [#allocation3], 0
      %s12 = sshll.u32 %s0, 4
      %s13 = int_to_ptr.hbm [resolvable:$true] %s12
      %s14 = sshll.u32 [#allocation2], 4
      %s15 = int_to_ptr.vmem [resolvable:$true] %s14
      %17 = dma.hbm_to_vmem [thread:$0]  %s13, 256, %s15, [#allocation3]
    $region5: #{tpu_custom_call.1} parent=1 // pred_fallthru
      _
    // Predicated region
    $region6: #{tpu_custom_call.1} parent=1 // pred_check
      _
    $region7: #{tpu_custom_call.1} parent=1 // pred_check_branch
      %19 = sbr.rel (0) target = $region9
    $region8: #{tpu_custom_call.1} parent=1 // pred_region
      %21 = dma.done [#allocation3], 256
    $region9: #{tpu_custom_call.1} parent=1 // pred_fallthru
      _
    %v22 = vld [vmem:[#allocation2] sm:$0xff]
    %v23 = vld [vmem:[#allocation2 + $0x8] sm:$0xff]
    %v24 = vadd.f32 %v22, %v23
    %25 = vadd.xlane.f32.xlu0 %v24
    %v26 = vpop.xlane.xlu0 %25
    %v27 = vmul.f32 %v26, 0.00390625
    %vm28 = vcmask 7168
    %29 = vst.msk [vmem:[%s1] sm:$0xff] %vm28, %v27
    // Predicated region
    $region10: #{tpu_custom_call.1} parent=1 // pred_check
      _
    $region11: #{tpu_custom_call.1} parent=1 // pred_check_branch
      %31 = sbr.rel (0) target = $region13
    $region12: #{tpu_custom_call.1} parent=1 // pred_region
      _
    $region13: #{tpu_custom_call.1} parent=1 // pred_fallthru
      _
    // Predicated region
    $region14: #{tpu_custom_call.1} parent=1 // pred_check
      _
    $region15: #{tpu_custom_call.1} parent=1 // pred_check_branch
      %33 = sbr.rel (0) target = $region17
    $region16: #{tpu_custom_call.1} parent=1 // pred_region
      _
    $region17: #{tpu_custom_call.1} parent=1 // pred_fallthru
      _
    %34 = vsyncpa [#allocation3], 1

</llo_original>
